<compile_context>
chip_gen: v5e
topology: v5e:2x2
jax: 0.10.0
libtpu: 0.0.40
codegen_flags: <defaults>
</compile_context>

<pallas_src>
import functools

import jax
import jax.numpy as jnp
from jax.experimental import pallas as pl
from jax.experimental.pallas import tpu as pltpu

_LANE = 128


def hardswish_linear_kernel(xT_ref, w_ref, b_ref, oT_ref):
    """xT: (K, TB) lane-dense, w: (OUT, K), b: (OUT, 1) -> oT: (OUT, TB)."""
    xT = xT_ref[...]                                   # (K, TB)
    w = w_ref[...]                                     # (OUT, K)
    # VPU contraction: K (=3) broadcast multiply-adds, unrolled at trace time.
    t1 = w[:, 0:1] * xT[0:1, :]                        # (OUT, TB)
    for k in range(1, xT_ref.shape[0]):
        t1 = t1 + w[:, k:k + 1] * xT[k:k + 1, :]
    t1 = t1 + b_ref[...]                               # bias broadcast along lanes
    # hardswish: t1 * clamp(t1 + 3, 0, 6) / 6   (divide folded into a multiply)
    gate = jnp.clip(t1 + 3.0, 0.0, 6.0)
    oT_ref[...] = (t1 * gate) * (1.0 / 6.0)


def _hardswish_linear_pallas(xT, weight, bias2d, *, tb):
    K, Bp = xT.shape
    OUT = weight.shape[0]
    nb = Bp // tb
    # Double-buffered (K->8 sublane-padded) x tile + (8, tb) out tile, plus
    # resident weight/bias and headroom.  ~8 MiB at tb=65536; capped at 64 MiB
    # so it is safe even on v7x's 64 MiB physical VMEM (v5e default is only
    # 16 MiB scoped, hence the explicit limit).
    vmem_bytes = min(64 << 20, max(4 << 20, 4 * 8 * tb * 4 + (2 << 20)))
    return pl.pallas_call(
        hardswish_linear_kernel,
        out_shape=jax.ShapeDtypeStruct((OUT, Bp), jnp.float32),
        grid=(nb,),
        in_specs=[
            pl.BlockSpec((K, tb), lambda i: (0, i)),     # x^T tile: lane-dense batch
            pl.BlockSpec((OUT, K), lambda i: (0, 0)),    # whole weight, resident
            pl.BlockSpec((OUT, 1), lambda i: (0, 0)),    # bias column, resident
        ],
        out_specs=pl.BlockSpec((OUT, tb), lambda i: (0, i)),
        compiler_params=pltpu.CompilerParams(
            dimension_semantics=("parallel",),
            vmem_limit_bytes=vmem_bytes,
        ),
    )(xT, weight, bias2d)


def _hardswish_linear_ref(x, weight, bias2d):
    t1 = x @ weight.T + bias2d[:, 0]
    return t1 * jnp.clip(t1 + 3.0, 0.0, 6.0) * (1.0 / 6.0)


def _choose_tiling(B, tb_max):
    """Pad B only to a multiple of 128 lanes; split into near-equal tiles."""
    b128 = pl.cdiv(B, _LANE) * _LANE          # lane-multiple padded batch
    nb = pl.cdiv(b128, tb_max)                # number of tiles (>=2 once B > tb_max)
    tb = pl.cdiv(b128 // _LANE, nb) * _LANE   # near-equal, lane-multiple tile
    Bp = nb * tb                              # total pad waste < nb * 128 columns
    return tb, Bp


@functools.partial(
    jax.jit,
    static_argnames=("tb_max", "small_batch_threshold", "force_pallas",
                     "return_transposed"),
)
def model_forward(x, weight, bias2d, *, tb_max=65536, small_batch_threshold=2048,
                  force_pallas=False, return_transposed=False):
    """x: (B, 3) f32, weight: (8, 3) f32, bias2d: (8, 1) f32 -> (B, 8) f32."""
    B, K = x.shape

    # Small-batch fast path: at tiny B this op is ~100 FLOPs and the
    # pallas_call launch/DMA overhead dominates; let XLA fuse it.
    if (B < small_batch_threshold) and not force_pallas:
        out = _hardswish_linear_ref(x, weight, bias2d)
        return out.T if return_transposed else out

    tb, Bp = _choose_tiling(B, tb_max)
    # Layout plumbing (plain JAX, single pad pass): batch becomes the lane axis.
    xT = jnp.pad(x, ((0, Bp - B), (0, 0))).T            # (K, Bp)
    oT = _hardswish_linear_pallas(xT, weight, bias2d, tb=tb)   # (8, Bp)
    oT = oT[:, :B]
    # If the consumer accepts the lane-dense (8, B) layout, skip the transpose
    # (it is ~1.5x the kernel's own HBM traffic at large B).
    return oT if return_transposed else oT.T


if __name__ == "__main__":
    key = jax.random.PRNGKey(0)
    kx, kw, kb, kx2 = jax.random.split(key, 4)

    IN, OUT = 3, 8
    # Deterministic init mimicking torch.nn.Linear(3, 8): U(-1/sqrt(3), 1/sqrt(3))
    bound = 1.0 / (IN ** 0.5)
    weight = jax.random.uniform(kw, (OUT, IN), dtype=jnp.float32,
                                minval=-bound, maxval=bound)
    bias = jax.random.uniform(kb, (OUT,), dtype=jnp.float32,
                              minval=-bound, maxval=bound)
    bias2d = bias.reshape(OUT, 1)   # prepared once at init, not per call

    # --- Test 1: tiny batch (like the original module, batch ~ 1-2), Pallas
    # path forced so the kernel itself is exercised. -------------------------
    x_small = jax.random.normal(kx, (2, IN), dtype=jnp.float32)
    out_small = model_forward(x_small, weight, bias2d, force_pallas=True)
    jax.block_until_ready(out_small)
    ref_small = _hardswish_linear_ref(x_small, weight, bias2d)
    assert out_small.shape == (2, OUT)
    assert jnp.allclose(out_small, ref_small, atol=1e-5, rtol=1e-5)

    # --- Test 2: B not a multiple of 128 (padding path), single tile. -------
    x_odd = jax.random.normal(kx2, (300, IN), dtype=jnp.float32)
    out_odd = model_forward(x_odd, weight, bias2d, force_pallas=True)
    jax.block_until_ready(out_odd)
    ref_odd = _hardswish_linear_ref(x_odd, weight, bias2d)
    assert out_odd.shape == (300, OUT)
    assert jnp.allclose(out_odd, ref_odd, atol=1e-5, rtol=1e-5)

    # --- Test 3: multi-tile grid (tb_max forced small so nb > 1). -----------
    out_multi = model_forward(x_odd, weight, bias2d, force_pallas=True, tb_max=128)
    jax.block_until_ready(out_multi)
    assert jnp.allclose(out_multi, ref_odd, atol=1e-5, rtol=1e-5)

    # --- Test 4: small-batch fast path (plain XLA dispatch). ----------------
    out_fast = model_forward(x_small, weight, bias2d)
    jax.block_until_ready(out_fast)
    assert jnp.allclose(out_fast, ref_small, atol=1e-5, rtol=1e-5)

    print("KERNEL_OK")
</pallas_src>

<mosaic_0001>
module attributes {stable_mosaic.version = 11 : i64} {
  func.func @hardswish_linear_kernel(%arg0: i32, %arg1: memref<3x128xf32, #tpu.memory_space<vmem>>, %arg2: memref<8x3xf32, #tpu.memory_space<vmem>>, %arg3: memref<8x1xf32, #tpu.memory_space<vmem>>, %arg4: memref<8x128xf32, #tpu.memory_space<vmem>>) attributes {dimension_semantics = [#tpu.dimension_semantics<parallel>], iteration_bounds = array<i64: 1>, scalar_prefetch = 0 : i64, scratch_operands = 0 : i64, tpu.core_type = #tpu.core_type<tc>, window_params = [{transform_indices = @transform_0, window_bounds = array<i64: 3, 128>}, {pipeline_mode = #tpu.pipeline_mode<synchronous>, transform_indices = @transform_1, window_bounds = array<i64: 8, 3>}, {pipeline_mode = #tpu.pipeline_mode<synchronous>, transform_indices = @transform_2, window_bounds = array<i64: 8, 1>}, {transform_indices = @transform_3, window_bounds = array<i64: 8, 128>}]} {
    %c0 = arith.constant 0 : index
    %c0_0 = arith.constant 0 : index
    %0 = vector.load %arg1[%c0, %c0_0] : memref<3x128xf32, #tpu.memory_space<vmem>>, vector<3x128xf32>
    %c0_1 = arith.constant 0 : index
    %c0_2 = arith.constant 0 : index
    %1 = vector.load %arg2[%c0_1, %c0_2] : memref<8x3xf32, #tpu.memory_space<vmem>>, vector<8x3xf32>
    %2 = vector.extract_strided_slice %1 {offsets = [0, 0], sizes = [8, 1], strides = [1, 1]} : vector<8x3xf32> to vector<8x1xf32>
    %3 = vector.extract_strided_slice %0 {offsets = [0, 0], sizes = [1, 128], strides = [1, 1]} : vector<3x128xf32> to vector<1x128xf32>
    %4 = vector.broadcast %2 : vector<8x1xf32> to vector<8x128xf32>
    %5 = vector.broadcast %3 : vector<1x128xf32> to vector<8x128xf32>
    %6 = arith.mulf %4, %5 : vector<8x128xf32>
    %7 = vector.extract_strided_slice %1 {offsets = [0, 1], sizes = [8, 1], strides = [1, 1]} : vector<8x3xf32> to vector<8x1xf32>
    %8 = vector.extract_strided_slice %0 {offsets = [1, 0], sizes = [1, 128], strides = [1, 1]} : vector<3x128xf32> to vector<1x128xf32>
    %9 = vector.broadcast %7 : vector<8x1xf32> to vector<8x128xf32>
    %10 = vector.broadcast %8 : vector<1x128xf32> to vector<8x128xf32>
    %11 = arith.mulf %9, %10 : vector<8x128xf32>
    %12 = arith.addf %6, %11 : vector<8x128xf32>
    %13 = vector.extract_strided_slice %1 {offsets = [0, 2], sizes = [8, 1], strides = [1, 1]} : vector<8x3xf32> to vector<8x1xf32>
    %14 = vector.extract_strided_slice %0 {offsets = [2, 0], sizes = [1, 128], strides = [1, 1]} : vector<3x128xf32> to vector<1x128xf32>
    %15 = vector.broadcast %13 : vector<8x1xf32> to vector<8x128xf32>
    %16 = vector.broadcast %14 : vector<1x128xf32> to vector<8x128xf32>
    %17 = arith.mulf %15, %16 : vector<8x128xf32>
    %18 = arith.addf %12, %17 : vector<8x128xf32>
    %c0_3 = arith.constant 0 : index
    %c0_4 = arith.constant 0 : index
    %19 = vector.load %arg3[%c0_3, %c0_4] : memref<8x1xf32, #tpu.memory_space<vmem>>, vector<8x1xf32>
    %20 = vector.broadcast %19 : vector<8x1xf32> to vector<8x128xf32>
    %21 = arith.addf %18, %20 : vector<8x128xf32>
    %cst = arith.constant 3.000000e+00 : f32
    %22 = vector.broadcast %cst : f32 to vector<8x128xf32>
    %23 = arith.addf %21, %22 : vector<8x128xf32>
    %cst_5 = arith.constant 0.000000e+00 : f32
    %cst_6 = arith.constant 6.000000e+00 : f32
    %24 = vector.broadcast %cst_5 : f32 to vector<8x128xf32>
    %25 = arith.maximumf %24, %23 : vector<8x128xf32>
    %26 = vector.broadcast %cst_6 : f32 to vector<8x128xf32>
    %27 = arith.minimumf %26, %25 : vector<8x128xf32>
    %28 = arith.mulf %21, %27 : vector<8x128xf32>
    %cst_7 = arith.constant 0.166666672 : f32
    %29 = vector.broadcast %cst_7 : f32 to vector<8x128xf32>
    %30 = arith.mulf %28, %29 : vector<8x128xf32>
    %c0_8 = arith.constant 0 : index
    %c0_9 = arith.constant 0 : index
    %31 = vector.load %arg4[%c0_8, %c0_9] : memref<8x128xf32, #tpu.memory_space<vmem>>, vector<8x128xf32>
    tpu.vector_store %arg4[%c0_8, %c0_9], %30 {strides = array<i32>} : memref<8x128xf32, #tpu.memory_space<vmem>>, vector<8x128xf32>,
    return
  }
  func.func @transform_0(%arg0: i32) -> (i32, i32) {
    %c0_i32 = arith.constant 0 : i32
    %c0_i32_0 = arith.constant 0 : i32
    return %c0_i32, %arg0 : i32, i32
  }
  func.func @transform_1(%arg0: i32) -> (i32, i32) {
    %c0_i32 = arith.constant 0 : i32
    %c0_i32_0 = arith.constant 0 : i32
    %c0_i32_1 = arith.constant 0 : i32
    return %c0_i32, %c0_i32_0 : i32, i32
  }
  func.func @transform_2(%arg0: i32) -> (i32, i32) {
    %c0_i32 = arith.constant 0 : i32
    %c0_i32_0 = arith.constant 0 : i32
    %c0_i32_1 = arith.constant 0 : i32
    return %c0_i32, %c0_i32_0 : i32, i32
  }
  func.func @transform_3(%arg0: i32) -> (i32, i32) {
    %c0_i32 = arith.constant 0 : i32
    %c0_i32_0 = arith.constant 0 : i32
    return %c0_i32, %arg0 : i32, i32
  }
}

</mosaic_0001>

<llo_original>
// kernel: model_forward.1
$region0: #{model_forward.1}
  #allocation0 [shape = 'u32[]', space=smem, size = 0x4, offset = 0x4, fixed_abs, tag = 'smem constant byte address 0x4 - core index']
  #allocation1 [shape = 'u32[72,128]{1,0:T(1,128)}', space=vmem, size = 0x9000, scoped, tag = 'internal scratch']
  %s0 = inlined_call_operand.vmem [shape: f32[3,128], index: 0, kind: input, shape index: {}]
  %s1 = inlined_call_operand.vmem [shape: f32[8,3], index: 1, kind: input, shape index: {}]
  %s2 = inlined_call_operand.vmem [shape: f32[8,1], index: 2, kind: input, shape index: {}]
  %s3 = inlined_call_operand.vmem [shape: f32[8,128], index: 3, kind: output, shape index: {}]
  %s4 = sld [smem:[#allocation0]]
  $region22: #{model_forward.1} parent=0
    _
  %s6 = ssub.s32 1, %s4
  %s7 = scalar_select 0, %s6, %s4
  // Predicated region
  $region2: #{model_forward.1} parent=0 // pred_check
    _
  $region3: #{model_forward.1} parent=0 // pred_check_branch
    %9 = sbr.rel (0) target = $region5
  $region4: #{model_forward.1} parent=0 // pred_region
    _
  $region5: #{model_forward.1} parent=0 // pred_fallthru
    _
  // Predicated region
  $region6: #{model_forward.1} parent=0 // pred_check
    _
  $region7: #{model_forward.1} parent=0 // pred_check_branch
    %11 = sbr.rel (0) target = $region9
  $region8: #{model_forward.1} parent=0 // pred_region
    _
  $region9: #{model_forward.1} parent=0 // pred_fallthru
    _
  // Predicated region
  $region10: #{model_forward.1} parent=0 // pred_check
    _
  $region11: #{model_forward.1} parent=0 // pred_check_branch
    %13 = sbr.rel (0) target = $region13
  $region12: #{model_forward.1} parent=0 // pred_region
    _
  $region13: #{model_forward.1} parent=0 // pred_fallthru
    _
  %v14 = vld [vmem:[%s0] sm:$0x7]
  %v15 = vld [vmem:[%s1] sm:$0xff]
  %17 = vset.pattern.permute.xlu0 0
  %18 = vperm.xlu0 %17, %v15
  %v19 = vpop.permute.xlu0 %18
  %v21 = vperm.slane %v14, 0
  %v22 = vmul.f32 %v19, %v21
  %23 = vset.pattern.permute.xlu0 1
  %24 = vperm.xlu0 %23, %v15
  %v25 = vpop.permute.xlu0 %24
  %v27 = vperm.slane %v14, 1
  %v28 = vmul.f32 %v25, %v27
  %v29 = vadd.f32 %v22, %v28
  %30 = vset.pattern.permute.xlu0 2
  %31 = vperm.xlu0 %30, %v15
  %v32 = vpop.permute.xlu0 %31
  %v34 = vperm.slane %v14, 2
  %v35 = vmul.f32 %v32, %v34
  %v36 = vadd.f32 %v29, %v35
  %v37 = vld [vmem:[%s2] sm:$0xff]
  %39 = vset.pattern.permute.xlu0 0
  %40 = vperm.xlu0 %39, %v37
  %v41 = vpop.permute.xlu0 %40
  %v43 = vadd.f32 %v36, %v41
  %v44 = vadd.f32 %v43, 3.0
  %v45 = vmax.f32 %v44, 0.0
  %v46 = vmin.f32 %v45, 6.0
  %v47 = vmul.f32 %v43, %v46
  %v48 = vmul.f32 %v47, 0.16666667
  %49 = vst [vmem:[%s3] sm:$0xff] %v48
  // Predicated region
  $region14: #{model_forward.1} parent=0 // pred_check
    _
  $region15: #{model_forward.1} parent=0 // pred_check_branch
    %51 = sbr.rel (0) target = $region17
  $region16: #{model_forward.1} parent=0 // pred_region
    _
  $region17: #{model_forward.1} parent=0 // pred_fallthru
    _
  // Predicated region
  $region18: #{model_forward.1} parent=0 // pred_check
    _
  $region19: #{model_forward.1} parent=0 // pred_check_branch
    %53 = sbr.rel (0) target = $region21
  $region20: #{model_forward.1} parent=0 // pred_region
    _
  $region21: #{model_forward.1} parent=0 // pred_fallthru
    _

</llo_original>
